<compile_context>
chip_gen: v6e
topology: v6e:2x2x1
jax: 0.10.0
libtpu: 0.0.40
codegen_flags: <defaults>
</compile_context>

<pallas_src>
import functools

import jax
import jax.numpy as jnp
from jax.experimental import pallas as pl
from jax.experimental.pallas import tpu as pltpu


# Explicit scoped-VMEM budget: above the 16 MiB v5e default, well under the
# 64 MiB physical VMEM of v7x.
_VMEM_LIMIT_BYTES = 32 * 1024 * 1024
# Use the fully-fused single-kernel path only when its resident footprint
# (all operands + output, double-buffered) fits comfortably.
_FUSED_VMEM_BUDGET = 20 * 1024 * 1024


def _round_up(v, m):
    return ((v + m - 1) // m) * m


def _pad2d(a, rows, cols):
    pr, pc = rows - a.shape[0], cols - a.shape[1]
    if pr == 0 and pc == 0:
        return a
    return jnp.pad(a, ((0, pr), (0, pc)))


# --------------------------------------------------------------------------
# Fused path: both GraphConvolution layers in one kernel (small/medium N).
# --------------------------------------------------------------------------
def _gcn_fused_kernel(x_ref, adj_ref, w1_ref, b1_ref, w2_ref, b2_ref, o_ref,
                      *, compute_dtype):
    cd = compute_dtype
    x = x_ref[...].astype(cd)
    adj = adj_ref[...]                      # already compute_dtype (cast once in wrapper)

    # gc1: adj @ (x @ W1) + b1, then ReLU   (bf16 MXU, f32 accumulate)
    s1 = jnp.dot(x, w1_ref[...].astype(cd), preferred_element_type=jnp.float32)
    h = jnp.dot(adj, s1.astype(cd), preferred_element_type=jnp.float32) + b1_ref[...]
    h = jnp.maximum(h, 0.0)

    # F.dropout(h, p, training=False) == identity (eval mode).

    # gc2: adj @ (h @ W2p) + b2p            (output padded to 128 lanes)
    s2 = jnp.dot(h.astype(cd), w2_ref[...].astype(cd), preferred_element_type=jnp.float32)
    out = jnp.dot(adj, s2.astype(cd), preferred_element_type=jnp.float32) + b2_ref[...]
    o_ref[...] = out.astype(o_ref.dtype)


def _gcn_forward_fused(x, adj_c, w1, b1, w2, b2, *, compute_dtype):
    n, fin = x.shape
    nhid = w1.shape[1]
    fout = w2.shape[1]
    fout_p = _round_up(fout, 128)           # lane-dense output stores

    w2_p = _pad2d(w2, w2.shape[0], fout_p)
    b1_2d = b1.reshape(1, nhid).astype(jnp.float32)
    b2_p = _pad2d(b2.reshape(1, fout), 1, fout_p).astype(jnp.float32)

    isz = jnp.dtype(x.dtype).itemsize
    csz = jnp.dtype(compute_dtype).itemsize
    flops = (2 * n * fin * nhid + 2 * n * n * nhid
             + 2 * n * nhid * fout_p + 2 * n * n * fout_p)
    bytes_accessed = (n * fin * isz + n * n * csz + fin * nhid * isz + nhid * 4
                      + nhid * fout_p * isz + fout_p * 4 + n * fout_p * isz)

    kernel = functools.partial(_gcn_fused_kernel, compute_dtype=compute_dtype)
    out_p = pl.pallas_call(
        kernel,
        out_shape=jax.ShapeDtypeStruct((n, fout_p), x.dtype),
        grid_spec=pltpu.PrefetchScalarGridSpec(
            num_scalar_prefetch=0,
            grid=(1,),
            in_specs=[
                pl.BlockSpec((n, fin), lambda i: (0, 0)),       # x (full)
                pl.BlockSpec((n, n), lambda i: (0, 0)),         # adj (full, bf16)
                pl.BlockSpec((fin, nhid), lambda i: (0, 0)),    # W1
                pl.BlockSpec((1, nhid), lambda i: (0, 0)),      # b1
                pl.BlockSpec((nhid, fout_p), lambda i: (0, 0)), # W2 (lane-padded)
                pl.BlockSpec((1, fout_p), lambda i: (0, 0)),    # b2 (lane-padded)
            ],
            out_specs=pl.BlockSpec((n, fout_p), lambda i: (0, 0)),
        ),
        compiler_params=pltpu.CompilerParams(
            dimension_semantics=("arbitrary",),
            vmem_limit_bytes=_VMEM_LIMIT_BYTES,
        ),
        cost_estimate=pl.CostEstimate(
            flops=int(flops), transcendentals=0, bytes_accessed=int(bytes_accessed)),
    )(x, adj_c, w1, b1_2d, w2_p, b2_p)
    return out_p[:, :fout]


# --------------------------------------------------------------------------
# Tiled path (large N): hoisted support matmul + K-tiled adj@support kernel.
# --------------------------------------------------------------------------
def _support_kernel(x_ref, w_ref, o_ref, *, compute_dtype):
    cd = compute_dtype
    o_ref[...] = jnp.dot(x_ref[...].astype(cd), w_ref[...].astype(cd),
                         preferred_element_type=jnp.float32).astype(o_ref.dtype)


def _adj_matmul_kernel(adj_ref, s_ref, b_ref, o_ref, acc_ref, *, apply_relu):
    k = pl.program_id(1)

    @pl.when(k == 0)
    def _init():
        acc_ref[...] = jnp.zeros_like(acc_ref)

    acc_ref[...] += jnp.dot(adj_ref[...], s_ref[...],
                            preferred_element_type=jnp.float32)

    @pl.when(k == pl.num_programs(1) - 1)
    def _finish():
        out = acc_ref[...] + b_ref[...]
        if apply_relu:
            out = jnp.maximum(out, 0.0)
        o_ref[...] = out.astype(o_ref.dtype)


def gcn_layer_tiled(x, adj_c, w, b, *, apply_relu, compute_dtype=jnp.bfloat16,
                    block_rows=512, block_k=512):
    """One GraphConvolution layer: adj @ (x @ w) + b (optional ReLU), streaming adj."""
    n, fin = x.shape
    fout = w.shape[1]
    fout_p = _round_up(fout, 128)

    bm = min(block_rows, _round_up(n, 8))
    bk = min(block_k, _round_up(n, 8))
    n_rows = _round_up(n, bm)               # padded adj rows / output rows
    n_cols = _round_up(n, bk)               # padded adj cols / support rows

    x_p = _pad2d(x, n_cols, fin)
    adj_p = _pad2d(adj_c, n_rows, n_cols)   # zero padding contributes nothing
    w_p = _pad2d(w, fin, fout_p)
    b_p = _pad2d(b.reshape(1, fout), 1, fout_p).astype(jnp.float32)

    # 1) support = x @ W, hoisted out of the adj loop (computed exactly once),
    #    stored in bf16 so the streaming matmul below is a native MXU bf16 path.
    support = pl.pallas_call(
        functools.partial(_support_kernel, compute_dtype=compute_dtype),
        out_shape=jax.ShapeDtypeStruct((n_cols, fout_p), compute_dtype),
        grid_spec=pltpu.PrefetchScalarGridSpec(
            num_scalar_prefetch=0,
            grid=(n_cols // bk,),
            in_specs=[
                pl.BlockSpec((bk, fin), lambda i: (i, 0)),
                pl.BlockSpec((fin, fout_p), lambda i: (0, 0)),
            ],
            out_specs=pl.BlockSpec((bk, fout_p), lambda i: (i, 0)),
        ),
        compiler_params=pltpu.CompilerParams(
            dimension_semantics=("parallel",),
            vmem_limit_bytes=_VMEM_LIMIT_BYTES,
        ),
        cost_estimate=pl.CostEstimate(
            flops=int(2 * n_cols * fin * fout_p), transcendentals=0,
            bytes_accessed=int(x_p.size * x_p.dtype.itemsize
                               + w_p.size * w_p.dtype.itemsize
                               + n_cols * fout_p * 2)),
    )(x_p, w_p)

    # 2) out = adj @ support + b: row tiles "parallel" (megacore), K tiles
    #    "arbitrary" with an f32 VMEM accumulator (init/finalize via pl.when).
    grid = (n_rows // bm, n_cols // bk)
    out_p = pl.pallas_call(
        functools.partial(_adj_matmul_kernel, apply_relu=apply_relu),
        out_shape=jax.ShapeDtypeStruct((n_rows, fout_p), x.dtype),
        grid_spec=pltpu.PrefetchScalarGridSpec(
            num_scalar_prefetch=0,
            grid=grid,
            in_specs=[
                pl.BlockSpec((bm, bk), lambda i, k: (i, k)),       # adj strip
                pl.BlockSpec((bk, fout_p), lambda i, k: (k, 0)),   # support strip
                pl.BlockSpec((1, fout_p), lambda i, k: (0, 0)),    # bias
            ],
            out_specs=pl.BlockSpec((bm, fout_p), lambda i, k: (i, 0)),
            scratch_shapes=[pltpu.VMEM((bm, fout_p), jnp.float32)],
        ),
        compiler_params=pltpu.CompilerParams(
            dimension_semantics=("parallel", "arbitrary"),
            vmem_limit_bytes=_VMEM_LIMIT_BYTES,
        ),
        cost_estimate=pl.CostEstimate(
            flops=int(2 * n_rows * n_cols * fout_p), transcendentals=0,
            bytes_accessed=int(adj_p.size * adj_p.dtype.itemsize
                               + n_cols * fout_p * 2 + n_rows * fout_p * 4)),
    )(adj_p, support, b_p)

    return out_p[:n, :fout]


# --------------------------------------------------------------------------
# GCN forward
# --------------------------------------------------------------------------
def gcn_forward(x, adj, w1, b1, w2, b2, *, compute_dtype=jnp.bfloat16,
                prefer_fused=True, block_rows=512, block_k=512):
    """GCN.forward (eval mode): relu(gc1(x, adj)) -> dropout(identity) -> gc2."""
    n, fin = x.shape
    nhid = w1.shape[1]
    fout = w2.shape[1]
    fout_p = _round_up(fout, 128)

    # adj is reused by both layers: cast once to the MXU compute dtype so every
    # subsequent DMA of it moves half the bytes.
    adj_c = adj.astype(compute_dtype)

    isz = jnp.dtype(x.dtype).itemsize
    csz = jnp.dtype(compute_dtype).itemsize
    fused_bytes = 2 * (n * fin * isz + n * n * csz + fin * nhid * isz + nhid * isz
                       + nhid * fout_p * isz + fout_p * isz + n * fout_p * isz)

    if prefer_fused and fused_bytes <= _FUSED_VMEM_BUDGET:
        return _gcn_forward_fused(x, adj_c, w1, b1, w2, b2, compute_dtype=compute_dtype)

    h = gcn_layer_tiled(x, adj_c, w1, b1, apply_relu=True,
                        compute_dtype=compute_dtype,
                        block_rows=block_rows, block_k=block_k)
    # F.dropout(h, p, training=False) == identity.
    out = gcn_layer_tiled(h, adj_c, w2, b2, apply_relu=False,
                          compute_dtype=compute_dtype,
                          block_rows=block_rows, block_k=block_k)
    return out


# --------------------------------------------------------------------------
# Flatten (dependent class): feat.view(feat.size(0), -1)
# --------------------------------------------------------------------------
def flatten(feat: jax.Array) -> jax.Array:
    """Flatten.forward. A .view() is a metadata-only reshape; per the perf review
    the copy kernel was removed — this is pure jnp.reshape (zero HBM traffic)."""
    return jnp.reshape(feat, (feat.shape[0], -1))


# --------------------------------------------------------------------------
if __name__ == "__main__":
    key = jax.random.PRNGKey(0)
    k1, k2, k3, k4, k5, k6, k7, k8, k9 = jax.random.split(key, 9)

    def _ref_forward(x, adj, w1, b1, w2, b2):
        h = jnp.maximum(
            jnp.dot(adj, jnp.dot(x, w1, precision="highest"), precision="highest") + b1,
            0.0)
        return jnp.dot(adj, jnp.dot(h, w2, precision="highest"), precision="highest") + b2

    # ---- GCN forward, fused path (demo shapes) ----
    n_nodes, nfeat, nhid, nout = 128, 64, 64, 16
    x = jax.random.normal(k1, (n_nodes, nfeat), dtype=jnp.float32)
    a = jax.random.uniform(k2, (n_nodes, n_nodes), dtype=jnp.float32)
    adj = a / jnp.sum(a, axis=1, keepdims=True)  # row-normalized adjacency
    w1 = jax.random.normal(k3, (nfeat, nhid), dtype=jnp.float32) / jnp.sqrt(nfeat)
    b1 = jax.random.normal(k4, (nhid,), dtype=jnp.float32) * 0.1
    w2 = jax.random.normal(k5, (nhid, nout), dtype=jnp.float32) / jnp.sqrt(nhid)
    b2 = jax.random.normal(k6, (nout,), dtype=jnp.float32) * 0.1

    out = jax.block_until_ready(gcn_forward(x, adj, w1, b1, w2, b2))
    ref = _ref_forward(x, adj, w1, b1, w2, b2)
    assert out.shape == (n_nodes, nout), out.shape
    assert out.dtype == x.dtype
    err = float(jnp.max(jnp.abs(out - ref)))
    # Tolerance absorbs bf16-operand / f32-accumulate matmuls (per perf review).
    assert jnp.allclose(out, ref, atol=5e-2, rtol=5e-2), f"fused GCN mismatch, max err {err}"

    # ---- GCN forward, tiled (hoisted-support + K-reduction) path ----
    n2 = 512
    x2 = jax.random.normal(k7, (n2, nfeat), dtype=jnp.float32)
    a2 = jax.random.uniform(k8, (n2, n2), dtype=jnp.float32)
    adj2 = a2 / jnp.sum(a2, axis=1, keepdims=True)
    out2 = jax.block_until_ready(
        gcn_forward(x2, adj2, w1, b1, w2, b2, prefer_fused=False,
                    block_rows=256, block_k=256))  # grid (2, 2): exercises accumulator
    ref2 = _ref_forward(x2, adj2, w1, b1, w2, b2)
    assert out2.shape == (n2, nout), out2.shape
    err2 = float(jnp.max(jnp.abs(out2 - ref2)))
    assert jnp.allclose(out2, ref2, atol=5e-2, rtol=5e-2), f"tiled GCN mismatch, max err {err2}"

    # ---- Flatten (dependent class) ----
    feat = jax.random.normal(k9, (2, 4, 16, 16), dtype=jnp.float32)
    fout_arr = jax.block_until_ready(flatten(feat))
    assert fout_arr.shape == (2, 4 * 16 * 16)
    assert jnp.array_equal(fout_arr, feat.reshape(2, -1)), "flatten mismatch"

    print("KERNEL_OK")
</pallas_src>

<mosaic_0001>
module attributes {stable_mosaic.version = 11 : i64} {
  func.func @_gcn_fused_kernel(%arg0: i32, %arg1: memref<128x64xf32, #tpu.memory_space<vmem>>, %arg2: memref<128x128xbf16, #tpu.memory_space<vmem>>, %arg3: memref<64x64xf32, #tpu.memory_space<vmem>>, %arg4: memref<1x64xf32, #tpu.memory_space<vmem>>, %arg5: memref<64x128xf32, #tpu.memory_space<vmem>>, %arg6: memref<1x128xf32, #tpu.memory_space<vmem>>, %arg7: memref<128x128xf32, #tpu.memory_space<vmem>>) attributes {dimension_semantics = [#tpu.dimension_semantics<arbitrary>], iteration_bounds = array<i64: 1>, scalar_prefetch = 0 : i64, scratch_operands = 0 : i64, tpu.core_type = #tpu.core_type<tc>, window_params = [{pipeline_mode = #tpu.pipeline_mode<synchronous>, transform_indices = @transform_0, window_bounds = array<i64: 128, 64>}, {pipeline_mode = #tpu.pipeline_mode<synchronous>, transform_indices = @transform_1, window_bounds = array<i64: 128, 128>}, {pipeline_mode = #tpu.pipeline_mode<synchronous>, transform_indices = @transform_2, window_bounds = array<i64: 64, 64>}, {pipeline_mode = #tpu.pipeline_mode<synchronous>, transform_indices = @transform_3, window_bounds = array<i64: 1, 64>}, {pipeline_mode = #tpu.pipeline_mode<synchronous>, transform_indices = @transform_4, window_bounds = array<i64: 64, 128>}, {pipeline_mode = #tpu.pipeline_mode<synchronous>, transform_indices = @transform_5, window_bounds = array<i64: 1, 128>}, {pipeline_mode = #tpu.pipeline_mode<synchronous>, transform_indices = @transform_6, window_bounds = array<i64: 128, 128>}]} {
    %c0 = arith.constant 0 : index
    %c0_0 = arith.constant 0 : index
    %0 = vector.load %arg1[%c0, %c0_0] : memref<128x64xf32, #tpu.memory_space<vmem>>, vector<128x64xf32>
    %1 = arith.truncf %0 : vector<128x64xf32> to vector<128x64xbf16>
    %c0_1 = arith.constant 0 : index
    %c0_2 = arith.constant 0 : index
    %2 = vector.load %arg2[%c0_1, %c0_2] : memref<128x128xbf16, #tpu.memory_space<vmem>>, vector<128x128xbf16>
    %c0_3 = arith.constant 0 : index
    %c0_4 = arith.constant 0 : index
    %3 = vector.load %arg3[%c0_3, %c0_4] : memref<64x64xf32, #tpu.memory_space<vmem>>, vector<64x64xf32>
    %4 = arith.truncf %3 : vector<64x64xf32> to vector<64x64xbf16>
    %cst = arith.constant dense<0.000000e+00> : vector<128x64xf32>
    %5 = tpu.matmul %1, %4, %cst {dimension_numbers = #tpu.dot_dimension_numbers<[1], [0], [0], [1], [0, 0, 1, 1], [], []>} : vector<128x64xbf16>, vector<64x64xbf16>, vector<128x64xf32> -> vector<128x64xf32>
    %6 = arith.truncf %5 : vector<128x64xf32> to vector<128x64xbf16>
    %cst_5 = arith.constant dense<0.000000e+00> : vector<128x64xf32>
    %7 = tpu.matmul %2, %6, %cst_5 {dimension_numbers = #tpu.dot_dimension_numbers<[1], [0], [0], [1], [0, 0, 1, 1], [], []>} : vector<128x128xbf16>, vector<128x64xbf16>, vector<128x64xf32> -> vector<128x64xf32>
    %c0_6 = arith.constant 0 : index
    %c0_7 = arith.constant 0 : index
    %8 = vector.load %arg4[%c0_6, %c0_7] : memref<1x64xf32, #tpu.memory_space<vmem>>, vector<1x64xf32>
    %9 = vector.broadcast %8 : vector<1x64xf32> to vector<128x64xf32>
    %10 = arith.addf %7, %9 : vector<128x64xf32>
    %cst_8 = arith.constant 0.000000e+00 : f32
    %11 = vector.broadcast %cst_8 : f32 to vector<128x64xf32>
    %12 = arith.maximumf %10, %11 : vector<128x64xf32>
    %13 = arith.truncf %12 : vector<128x64xf32> to vector<128x64xbf16>
    %c0_9 = arith.constant 0 : index
    %c0_10 = arith.constant 0 : index
    %14 = vector.load %arg5[%c0_9, %c0_10] : memref<64x128xf32, #tpu.memory_space<vmem>>, vector<64x128xf32>
    %15 = arith.truncf %14 : vector<64x128xf32> to vector<64x128xbf16>
    %cst_11 = arith.constant dense<0.000000e+00> : vector<128x128xf32>
    %16 = tpu.matmul %13, %15, %cst_11 {dimension_numbers = #tpu.dot_dimension_numbers<[1], [0], [0], [1], [0, 0, 1, 1], [], []>} : vector<128x64xbf16>, vector<64x128xbf16>, vector<128x128xf32> -> vector<128x128xf32>
    %17 = arith.truncf %16 : vector<128x128xf32> to vector<128x128xbf16>
    %cst_12 = arith.constant dense<0.000000e+00> : vector<128x128xf32>
    %18 = tpu.matmul %2, %17, %cst_12 {dimension_numbers = #tpu.dot_dimension_numbers<[1], [0], [0], [1], [0, 0, 1, 1], [], []>} : vector<128x128xbf16>, vector<128x128xbf16>, vector<128x128xf32> -> vector<128x128xf32>
    %c0_13 = arith.constant 0 : index
    %c0_14 = arith.constant 0 : index
    %19 = vector.load %arg6[%c0_13, %c0_14] : memref<1x128xf32, #tpu.memory_space<vmem>>, vector<1x128xf32>
    %20 = vector.broadcast %19 : vector<1x128xf32> to vector<128x128xf32>
    %21 = arith.addf %18, %20 : vector<128x128xf32>
    %c0_15 = arith.constant 0 : index
    %c0_16 = arith.constant 0 : index
    %22 = vector.load %arg7[%c0_15, %c0_16] : memref<128x128xf32, #tpu.memory_space<vmem>>, vector<128x128xf32>
    tpu.vector_store %arg7[%c0_15, %c0_16], %21 {strides = array<i32>} : memref<128x128xf32, #tpu.memory_space<vmem>>, vector<128x128xf32>,
    return
  }
  func.func @transform_0(%arg0: i32) -> (i32, i32) {
    %c0_i32 = arith.constant 0 : i32
    %c0_i32_0 = arith.constant 0 : i32
    %c0_i32_1 = arith.constant 0 : i32
    return %c0_i32, %c0_i32_0 : i32, i32
  }
  func.func @transform_1(%arg0: i32) -> (i32, i32) {
    %c0_i32 = arith.constant 0 : i32
    %c0_i32_0 = arith.constant 0 : i32
    %c0_i32_1 = arith.constant 0 : i32
    return %c0_i32, %c0_i32_0 : i32, i32
  }
  func.func @transform_2(%arg0: i32) -> (i32, i32) {
    %c0_i32 = arith.constant 0 : i32
    %c0_i32_0 = arith.constant 0 : i32
    %c0_i32_1 = arith.constant 0 : i32
    return %c0_i32, %c0_i32_0 : i32, i32
  }
  func.func @transform_3(%arg0: i32) -> (i32, i32) {
    %c0_i32 = arith.constant 0 : i32
    %c0_i32_0 = arith.constant 0 : i32
    %c0_i32_1 = arith.constant 0 : i32
    return %c0_i32, %c0_i32_0 : i32, i32
  }
  func.func @transform_4(%arg0: i32) -> (i32, i32) {
    %c0_i32 = arith.constant 0 : i32
    %c0_i32_0 = arith.constant 0 : i32
    %c0_i32_1 = arith.constant 0 : i32
    return %c0_i32, %c0_i32_0 : i32, i32
  }
  func.func @transform_5(%arg0: i32) -> (i32, i32) {
    %c0_i32 = arith.constant 0 : i32
    %c0_i32_0 = arith.constant 0 : i32
    %c0_i32_1 = arith.constant 0 : i32
    return %c0_i32, %c0_i32_0 : i32, i32
  }
  func.func @transform_6(%arg0: i32) -> (i32, i32) {
    %c0_i32 = arith.constant 0 : i32
    %c0_i32_0 = arith.constant 0 : i32
    %c0_i32_1 = arith.constant 0 : i32
    return %c0_i32, %c0_i32_0 : i32, i32
  }
}

</mosaic_0001>

<llo_original>
// kernel: tpu_custom_call.1
$region0: #{tpu_custom_call.1}
  #allocation0 [shape = 'u32[]', space=smem, size = 0x4, offset = 0x4, fixed_abs, tag = 'smem constant byte address 0x4 - core index']
  #allocation1 [shape = 'u32[144,128]{1,0:T(1,128)}', space=vmem, size = 0x12000, scoped, tag = 'internal scratch']
  %s0 = inlined_call_operand.vmem [shape: f32[128,64], index: 0, kind: input, shape index: {}]
  %s1 = inlined_call_operand.vmem [shape: bf16[128,128], index: 1, kind: input, shape index: {}]
  %s2 = inlined_call_operand.vmem [shape: f32[64,64], index: 2, kind: input, shape index: {}]
  %s3 = inlined_call_operand.vmem [shape: f32[1,64], index: 3, kind: input, shape index: {}]
  %s4 = inlined_call_operand.vmem [shape: f32[64,128], index: 4, kind: input, shape index: {}]
  %s5 = inlined_call_operand.vmem [shape: f32[1,128], index: 5, kind: input, shape index: {}]
  %s6 = inlined_call_operand.hbm [shape: f32[128,128], index: 6, kind: output, shape index: {}]
  %s7 = sld [smem:[#allocation0]]
  $region34: #{tpu_custom_call.1} parent=0
    _
  %s9 = ssub.s32 1, %s7
  %s10 = scalar_select 0, %s9, %s7
  $region1: #{tpu_custom_call.1} parent=0
    #allocation2 [shape = 'u8[65536]{0}', space=vmem, size = 0x10000, scoped, tag = 'output window, operand 0, single buffered']
    #allocation3 [shape = 's32[1]{0}', space=sflag, size = 0x4, scoped, tag = 'scoped memory for tpu_custom_call.1']
    %11 = vsyncpa [#allocation3], 0
    // Predicated region
    $region2: #{tpu_custom_call.1} parent=1 // pred_check
      _
    $region3: #{tpu_custom_call.1} parent=1 // pred_check_branch
      %13 = sbr.rel (0) target = $region5
    $region4: #{tpu_custom_call.1} parent=1 // pred_region
      _
    $region5: #{tpu_custom_call.1} parent=1 // pred_fallthru
      _
    // Predicated region
    $region6: #{tpu_custom_call.1} parent=1 // pred_check
      _
    $region7: #{tpu_custom_call.1} parent=1 // pred_check_branch
      %15 = sbr.rel (0) target = $region9
    $region8: #{tpu_custom_call.1} parent=1 // pred_region
      _
    $region9: #{tpu_custom_call.1} parent=1 // pred_fallthru
      _
    // Predicated region
    $region10: #{tpu_custom_call.1} parent=1 // pred_check
      _
    $region11: #{tpu_custom_call.1} parent=1 // pred_check_branch
      %17 = sbr.rel (0) target = $region13
    $region12: #{tpu_custom_call.1} parent=1 // pred_region
      _
    $region13: #{tpu_custom_call.1} parent=1 // pred_fallthru
      _
    // Predicated region
    $region14: #{tpu_custom_call.1} parent=1 // pred_check
      _
    $region15: #{tpu_custom_call.1} parent=1 // pred_check_branch
      %19 = sbr.rel (0) target = $region17
    $region16: #{tpu_custom_call.1} parent=1 // pred_region
      _
    $region17: #{tpu_custom_call.1} parent=1 // pred_fallthru
      _
    // Predicated region
    $region18: #{tpu_custom_call.1} parent=1 // pred_check
      _
    $region19: #{tpu_custom_call.1} parent=1 // pred_check_branch
      %21 = sbr.rel (0) target = $region21
    $region20: #{tpu_custom_call.1} parent=1 // pred_region
      _
    $region21: #{tpu_custom_call.1} parent=1 // pred_fallthru
      _
    // Predicated region
    $region22: #{tpu_custom_call.1} parent=1 // pred_check
      _
    $region23: #{tpu_custom_call.1} parent=1 // pred_check_branch
      %23 = sbr.rel (0) target = $region25
    $region24: #{tpu_custom_call.1} parent=1 // pred_region
      _
    $region25: #{tpu_custom_call.1} parent=1 // pred_fallthru
      _
    %v25 = vld [vmem:[%s0] sm:$0xff]
    %v26 = vld [vmem:[%s0 + $0x8] sm:$0xff]
    %v27 = vld [vmem:[%s0 + $0x10] sm:$0xff]
    %v28 = vld [vmem:[%s0 + $0x18] sm:$0xff]
    %v29 = vld [vmem:[%s0 + $0x20] sm:$0xff]
    %v30 = vld [vmem:[%s0 + $0x28] sm:$0xff]
    %v31 = vld [vmem:[%s0 + $0x30] sm:$0xff]
    %v32 = vld [vmem:[%s0 + $0x38] sm:$0xff]
    %v33 = vld [vmem:[%s0 + $0x40] sm:$0xff]
    %v34 = vld [vmem:[%s0 + $0x48] sm:$0xff]
    %v35 = vld [vmem:[%s0 + $0x50] sm:$0xff]
    %v36 = vld [vmem:[%s0 + $0x58] sm:$0xff]
    %v37 = vld [vmem:[%s0 + $0x60] sm:$0xff]
    %v38 = vld [vmem:[%s0 + $0x68] sm:$0xff]
    %v39 = vld [vmem:[%s0 + $0x70] sm:$0xff]
    %v40 = vld [vmem:[%s0 + $0x78] sm:$0xff]
    %v41 = vpack.c.bf16 %v26, %v25
    %v42 = vpack.c.bf16 %v28, %v27
    %v43 = vpack.c.bf16 %v30, %v29
    %v44 = vpack.c.bf16 %v32, %v31
    %v45 = vpack.c.bf16 %v34, %v33
    %v46 = vpack.c.bf16 %v36, %v35
    %v47 = vpack.c.bf16 %v38, %v37
    %v48 = vpack.c.bf16 %v40, %v39
    %v49 = vld [vmem:[%s1] sm:$0xf]
    %v50 = vld [vmem:[%s1 + $0x4] sm:$0xf]
    %v51 = vld [vmem:[%s1 + $0x8] sm:$0xf]
    %v52 = vld [vmem:[%s1 + $0xc] sm:$0xf]
    %v53 = vld [vmem:[%s1 + $0x10] sm:$0xf]
    %v54 = vld [vmem:[%s1 + $0x14] sm:$0xf]
    %v55 = vld [vmem:[%s1 + $0x18] sm:$0xf]
    %v56 = vld [vmem:[%s1 + $0x1c] sm:$0xf]
    %v57 = vld [vmem:[%s1 + $0x20] sm:$0xf]
    %v58 = vld [vmem:[%s1 + $0x24] sm:$0xf]
    %v59 = vld [vmem:[%s1 + $0x28] sm:$0xf]
    %v60 = vld [vmem:[%s1 + $0x2c] sm:$0xf]
    %v61 = vld [vmem:[%s1 + $0x30] sm:$0xf]
    %v62 = vld [vmem:[%s1 + $0x34] sm:$0xf]
    %v63 = vld [vmem:[%s1 + $0x38] sm:$0xf]
    %v64 = vld [vmem:[%s1 + $0x3c] sm:$0xf]
    %v65 = vld [vmem:[%s2] sm:$0xff]
    %v66 = vld [vmem:[%s2 + $0x8] sm:$0xff]
    %v67 = vld [vmem:[%s2 + $0x10] sm:$0xff]
    %v68 = vld [vmem:[%s2 + $0x18] sm:$0xff]
    %v69 = vld [vmem:[%s2 + $0x20] sm:$0xff]
    %v70 = vld [vmem:[%s2 + $0x28] sm:$0xff]
    %v71 = vld [vmem:[%s2 + $0x30] sm:$0xff]
    %v72 = vld [vmem:[%s2 + $0x38] sm:$0xff]
    %v73 = vpack.c.bf16 %v66, %v65
    %v74 = vpack.c.bf16 %v68, %v67
    %v75 = vpack.c.bf16 %v70, %v69
    %v76 = vpack.c.bf16 %v72, %v71
    %vm77 = vcmask 523264
    %v79 = vsel %vm77, %v41, 0
    %v82 = vsel %vm77, %v42, 0
    %v85 = vsel %vm77, %v43, 0
    %v88 = vsel %vm77, %v44, 0
    %v91 = vsel %vm77, %v45, 0
    %v94 = vsel %vm77, %v46, 0
    %v97 = vsel %vm77, %v47, 0
    %v100 = vsel %vm77, %v48, 0
    %102 = vmatprep.subr.bf16.mxu0 0
    %103 = vmatpush1.bf16.msra.mxu0 0
    %104 = vmatprep.subr.bf16.mxu0 0
    %105 = vmatpush1.bf16.msra.mxu0 0
    %106 = vmatprep.subr.bf16.mxu0 0
    %107 = vmatpush1.bf16.msra.mxu0 0
    %108 = vmatprep.subr.bf16.mxu0 0
    %109 = vmatpush1.bf16.msra.mxu0 0
    %110 = vmatprep.subr.bf16.mxu0 0
    %111 = vmatpush1.bf16.msra.mxu0 %v76
    %112 = vmatprep.subr.bf16.mxu0 0
    %113 = vmatpush1.bf16.msra.mxu0 %v75
    %114 = vmatprep.subr.bf16.mxu0 0
    %115 = vmatpush1.bf16.msra.mxu0 %v74
    %116 = vmatprep.subr.bf16.mxu0 0
    %117 = vmatpush1.bf16.msra.mxu0 %v73
    %118 = vmatprep.subr.bf16.mxu0 0
    %119 = vmatpush2.bf16.msra.mxu0 0
    %120 = vmatprep.subr.bf16.mxu0 0
    %121 = vmatpush2.bf16.msra.mxu0 0
    %122 = vmatprep.subr.bf16.mxu0 0
    %123 = vmatpush2.bf16.msra.mxu0 0
    %124 = vmatprep.subr.bf16.mxu0 0
    %125 = vmatpush2.bf16.msra.mxu0 0
    %126 = vmatprep.subr.bf16.mxu0 0
    %127 = vmatpush2.bf16.msra.mxu0 0
    %128 = vmatprep.subr.bf16.mxu0 0
    %129 = vmatpush2.bf16.msra.mxu0 0
    %130 = vmatprep.subr.bf16.mxu0 0
    %131 = vmatpush2.bf16.msra.mxu0 0
    %132 = vmatprep.subr.bf16.mxu0 0
    %133 = vmatpush2.bf16.msra.mxu0 0
    %134 = vmatprep.mubr.bf16.mxu0 0
    %135 = vmatmul.mubr.bf16.gmra.mxu0 %v79
    %v136 = vpop.f32.mrf.mxu0
    %v137 = vadd.f32 0.0, %v136
    %v138 = vpop.f32.mrf.mxu0
    %v139 = vpop.f32.mrf.mxu0
    %v140 = vadd.f32 0.0, %v139
    %v141 = vpop.f32.mrf.mxu0
    %142 = vmatprep.mubr.bf16.mxu0 0
    %143 = vmatmul.mubr.bf16.gmra.mxu0 %v82
    %v144 = vpop.f32.mrf.mxu0
    %v145 = vadd.f32 0.0, %v144
    %v146 = vpop.f32.mrf.mxu0
    %v147 = vpop.f32.mrf.mxu0
    %v148 = vadd.f32 0.0, %v147
    %v149 = vpop.f32.mrf.mxu0
    %150 = vmatprep.mubr.bf16.mxu0 0
    %151 = vmatmul.mubr.bf16.gmra.mxu0 %v85
    %v152 = vpop.f32.mrf.mxu0
    %v153 = vadd.f32 0.0, %v152
    %v154 = vpop.f32.mrf.mxu0
    %v155 = vpop.f32.mrf.mxu0
    %v156 = vadd.f32 0.0, %v155
    %v157 = vpop.f32.mrf.mxu0
    %158 = vmatprep.mubr.bf16.mxu0 0
    %159 = vmatmul.mubr.bf16.gmra.mxu0 %v88
    %v160 = vpop.f32.mrf.mxu0
    %v161 = vadd.f32 0.0, %v160
    %v162 = vpop.f32.mrf.mxu0
    %v163 = vpop.f32.mrf.mxu0
    %v164 = vadd.f32 0.0, %v163
    %v165 = vpop.f32.mrf.mxu0
    %166 = vmatprep.mubr.bf16.mxu0 0
    %167 = vmatmul.mubr.bf16.gmra.mxu0 %v91
    %v168 = vpop.f32.mrf.mxu0
    %v169 = vadd.f32 0.0, %v168
    %v170 = vpop.f32.mrf.mxu0
    %v171 = vpop.f32.mrf.mxu0
    %v172 = vadd.f32 0.0, %v171
    %v173 = vpop.f32.mrf.mxu0
    %174 = vmatprep.mubr.bf16.mxu0 0
    %175 = vmatmul.mubr.bf16.gmra.mxu0 %v94
    %v176 = vpop.f32.mrf.mxu0
    %v177 = vadd.f32 0.0, %v176
    %v178 = vpop.f32.mrf.mxu0
    %v179 = vpop.f32.mrf.mxu0
    %v180 = vadd.f32 0.0, %v179
    %v181 = vpop.f32.mrf.mxu0
    %182 = vmatprep.mubr.bf16.mxu0 0
    %183 = vmatmul.mubr.bf16.gmra.mxu0 %v97
    %v184 = vpop.f32.mrf.mxu0
    %v185 = vadd.f32 0.0, %v184
    %v186 = vpop.f32.mrf.mxu0
    %v187 = vpop.f32.mrf.mxu0
    %v188 = vadd.f32 0.0, %v187
    %v189 = vpop.f32.mrf.mxu0
    %190 = vmatprep.mubr.bf16.mxu0 0
    %191 = vmatmul.mubr.bf16.gmra.mxu0 %v100
    %v192 = vpop.f32.mrf.mxu0
    %v193 = vadd.f32 0.0, %v192
    %v194 = vpop.f32.mrf.mxu0
    %v195 = vpop.f32.mrf.mxu0
    %v196 = vadd.f32 0.0, %v195
    %v197 = vpop.f32.mrf.mxu0
    %198 = vdwg.mxu0
    %v199 = vpack.c.bf16 %v140, %v137
    %v200 = vpack.c.bf16 %v148, %v145
    %v201 = vpack.c.bf16 %v156, %v153
    %v202 = vpack.c.bf16 %v164, %v161
    %v203 = vpack.c.bf16 %v172, %v169
    %v204 = vpack.c.bf16 %v180, %v177
    %v205 = vpack.c.bf16 %v188, %v185
    %v206 = vpack.c.bf16 %v196, %v193
    %v207 = vld [vmem:[%s3] sm:$0x1]
    %v209 = vlaneseq
    %v210 = vshrl.u32 %v209, 7
    %v211 = vsub.s32 0, %v210
    %v212 = vrot.slane %v207, %v211
    %v230 = vunpack.c.l.b16 %v49
    %v231 = vunpack.c.l.b16 %v50
    %v232 = vunpack.c.l.b16 %v51
    %v233 = vunpack.c.l.b16 %v52
    %v234 = vunpack.c.l.b16 %v53
    %v235 = vunpack.c.l.b16 %v54
    %v236 = vunpack.c.l.b16 %v55
    %v237 = vunpack.c.l.b16 %v56
    %v238 = vunpack.c.l.b16 %v57
    %v239 = vunpack.c.l.b16 %v58
    %v240 = vunpack.c.l.b16 %v59
    %v241 = vunpack.c.l.b16 %v60
    %v242 = vunpack.c.l.b16 %v61
    %v243 = vunpack.c.l.b16 %v62
    %v244 = vunpack.c.l.b16 %v63
    %v245 = vunpack.c.l.b16 %v64
    %v246 = vpack.c.b16 %v231, %v230
    %v247 = vpack.c.b16 %v233, %v232
    %v248 = vpack.c.b16 %v235, %v234
    %v249 = vpack.c.b16 %v237, %v236
    %v250 = vpack.c.b16 %v239, %v238
    %v251 = vpack.c.b16 %v241, %v240
    %v252 = vpack.c.b16 %v243, %v242
    %v253 = vpack.c.b16 %v245, %v244
    %262 = vmatprep.subr.bf16.mxu0 0
    %263 = vmatpush1.bf16.msra.mxu0 %v206
    %264 = vmatprep.subr.bf16.mxu0 0
    %265 = vmatpush1.bf16.msra.mxu0 %v205
    %266 = vmatprep.subr.bf16.mxu0 0
    %267 = vmatpush1.bf16.msra.mxu0 %v204
    %268 = vmatprep.subr.bf16.mxu0 0
    %269 = vmatpush1.bf16.msra.mxu0 %v203
    %270 = vmatprep.subr.bf16.mxu0 0
    %271 = vmatpush1.bf16.msra.mxu0 %v202
    %272 = vmatprep.subr.bf16.mxu0 0
    %273 = vmatpush1.bf16.msra.mxu0 %v201
    %274 = vmatprep.subr.bf16.mxu0 0
    %275 = vmatpush1.bf16.msra.mxu0 %v200
    %276 = vmatprep.subr.bf16.mxu0 0
    %277 = vmatpush1.bf16.msra.mxu0 %v199
    %278 = vmatprep.subr.bf16.mxu0 0
    %279 = vmatpush2.bf16.msra.mxu0 0
    %280 = vmatprep.subr.bf16.mxu0 0
    %281 = vmatpush2.bf16.msra.mxu0 0
    %282 = vmatprep.subr.bf16.mxu0 0
    %283 = vmatpush2.bf16.msra.mxu0 0
    %284 = vmatprep.subr.bf16.mxu0 0
    %285 = vmatpush2.bf16.msra.mxu0 0
    %286 = vmatprep.subr.bf16.mxu0 0
    %287 = vmatpush2.bf16.msra.mxu0 0
    %288 = vmatprep.subr.bf16.mxu0 0
    %289 = vmatpush2.bf16.msra.mxu0 0
    %290 = vmatprep.subr.bf16.mxu0 0
    %291 = vmatpush2.bf16.msra.mxu0 0
    %292 = vmatprep.subr.bf16.mxu0 0
    %293 = vmatpush2.bf16.msra.mxu0 0
    %294 = vmatprep.mubr.bf16.mxu0 0
    %295 = vmatmul.mubr.bf16.gmra.mxu0 %v246
    %v296 = vpop.f32.mrf.mxu0
    %v297 = vadd.f32 %v212, %v296
    %v298 = vpop.f32.mrf.mxu0
    %v299 = vpop.f32.mrf.mxu0
    %v300 = vadd.f32 %v212, %v299
    %v301 = vpop.f32.mrf.mxu0
    %302 = vmatprep.mubr.bf16.mxu0 0
    %303 = vmatmul.mubr.bf16.gmra.mxu0 %v247
    %v304 = vpop.f32.mrf.mxu0
    %v305 = vadd.f32 %v212, %v304
    %v306 = vpop.f32.mrf.mxu0
    %v307 = vpop.f32.mrf.mxu0
    %v308 = vadd.f32 %v212, %v307
    %v309 = vpop.f32.mrf.mxu0
    %310 = vmatprep.mubr.bf16.mxu0 0
    %311 = vmatmul.mubr.bf16.gmra.mxu0 %v248
    %v312 = vpop.f32.mrf.mxu0
    %v313 = vadd.f32 %v212, %v312
    %v314 = vpop.f32.mrf.mxu0
    %v315 = vpop.f32.mrf.mxu0
    %v316 = vadd.f32 %v212, %v315
    %v317 = vpop.f32.mrf.mxu0
    %318 = vmatprep.mubr.bf16.mxu0 0
    %319 = vmatmul.mubr.bf16.gmra.mxu0 %v249
    %v320 = vpop.f32.mrf.mxu0
    %v321 = vadd.f32 %v212, %v320
    %v322 = vpop.f32.mrf.mxu0
    %v323 = vpop.f32.mrf.mxu0
    %v324 = vadd.f32 %v212, %v323
    %v325 = vpop.f32.mrf.mxu0
    %326 = vmatprep.mubr.bf16.mxu0 0
    %327 = vmatmul.mubr.bf16.gmra.mxu0 %v250
    %v328 = vpop.f32.mrf.mxu0
    %v329 = vadd.f32 %v212, %v328
    %v330 = vpop.f32.mrf.mxu0
    %v331 = vpop.f32.mrf.mxu0
    %v332 = vadd.f32 %v212, %v331
    %v333 = vpop.f32.mrf.mxu0
    %334 = vmatprep.mubr.bf16.mxu0 0
    %335 = vmatmul.mubr.bf16.gmra.mxu0 %v251
    %v336 = vpop.f32.mrf.mxu0
    %v337 = vadd.f32 %v212, %v336
    %v338 = vpop.f32.mrf.mxu0
    %v339 = vpop.f32.mrf.mxu0
    %v340 = vadd.f32 %v212, %v339
    %v341 = vpop.f32.mrf.mxu0
    %342 = vmatprep.mubr.bf16.mxu0 0
    %343 = vmatmul.mubr.bf16.gmra.mxu0 %v252
    %v344 = vpop.f32.mrf.mxu0
    %v345 = vadd.f32 %v212, %v344
    %v346 = vpop.f32.mrf.mxu0
    %v347 = vpop.f32.mrf.mxu0
    %v348 = vadd.f32 %v212, %v347
    %v349 = vpop.f32.mrf.mxu0
    %350 = vmatprep.mubr.bf16.mxu0 0
    %351 = vmatmul.mubr.bf16.gmra.mxu0 %v253
    %v352 = vpop.f32.mrf.mxu0
    %v353 = vadd.f32 %v212, %v352
    %v354 = vpop.f32.mrf.mxu0
    %v355 = vpop.f32.mrf.mxu0
    %v356 = vadd.f32 %v212, %v355
    %v357 = vpop.f32.mrf.mxu0
    %358 = vdwg.mxu0
    %v359 = vmax.f32 %v297, 0.0
    %v360 = vmax.f32 %v300, 0.0
    %v361 = vmax.f32 %v305, 0.0
    %v362 = vmax.f32 %v308, 0.0
    %v363 = vmax.f32 %v313, 0.0
    %v364 = vmax.f32 %v316, 0.0
    %v365 = vmax.f32 %v321, 0.0
    %v366 = vmax.f32 %v324, 0.0
    %v367 = vmax.f32 %v329, 0.0
    %v368 = vmax.f32 %v332, 0.0
    %v369 = vmax.f32 %v337, 0.0
    %v370 = vmax.f32 %v340, 0.0
    %v371 = vmax.f32 %v345, 0.0
    %v372 = vmax.f32 %v348, 0.0
    %v373 = vmax.f32 %v353, 0.0
    %v374 = vmax.f32 %v356, 0.0
    %v375 = vpack.c.bf16 %v360, %v359
    %v376 = vpack.c.bf16 %v362, %v361
    %v377 = vpack.c.bf16 %v364, %v363
    %v378 = vpack.c.bf16 %v366, %v365
    %v379 = vpack.c.bf16 %v368, %v367
    %v380 = vpack.c.bf16 %v370, %v369
    %v381 = vpack.c.bf16 %v372, %v371
    %v382 = vpack.c.bf16 %v374, %v373
    %v383 = vld [vmem:[%s4] sm:$0xff]
    %v384 = vld [vmem:[%s4 + $0x8] sm:$0xff]
    %v385 = vld [vmem:[%s4 + $0x10] sm:$0xff]
    %v386 = vld [vmem:[%s4 + $0x18] sm:$0xff]
    %v387 = vld [vmem:[%s4 + $0x20] sm:$0xff]
    %v388 = vld [vmem:[%s4 + $0x28] sm:$0xff]
    %v389 = vld [vmem:[%s4 + $0x30] sm:$0xff]
    %v390 = vld [vmem:[%s4 + $0x38] sm:$0xff]
    %v391 = vpack.c.bf16 %v384, %v383
    %v392 = vpack.c.bf16 %v386, %v385
    %v393 = vpack.c.bf16 %v388, %v387
    %v394 = vpack.c.bf16 %v390, %v389
    %v396 = vsel %vm77, %v375, 0
    %v399 = vsel %vm77, %v376, 0
    %v402 = vsel %vm77, %v377, 0
    %v405 = vsel %vm77, %v378, 0
    %v408 = vsel %vm77, %v379, 0
    %v411 = vsel %vm77, %v380, 0
    %v414 = vsel %vm77, %v381, 0
    %v417 = vsel %vm77, %v382, 0
    %419 = vmatprep.subr.bf16.mxu0 0
    %420 = vmatpush1.bf16.msra.mxu0 0
    %421 = vmatprep.subr.bf16.mxu0 0
    %422 = vmatpush1.bf16.msra.mxu0 0
    %423 = vmatprep.subr.bf16.mxu0 0
    %424 = vmatpush1.bf16.msra.mxu0 0
    %425 = vmatprep.subr.bf16.mxu0 0
    %426 = vmatpush1.bf16.msra.mxu0 0
    %427 = vmatprep.subr.bf16.mxu0 0
    %428 = vmatpush1.bf16.msra.mxu0 %v394
    %429 = vmatprep.subr.bf16.mxu0 0
    %430 = vmatpush1.bf16.msra.mxu0 %v393
    %431 = vmatprep.subr.bf16.mxu0 0
    %432 = vmatpush1.bf16.msra.mxu0 %v392
    %433 = vmatprep.subr.bf16.mxu0 0
    %434 = vmatpush1.bf16.msra.mxu0 %v391
    %435 = vmatprep.subr.bf16.mxu0 0
    %436 = vmatpush2.bf16.msra.mxu0 0
    %437 = vmatprep.subr.bf16.mxu0 0
    %438 = vmatpush2.bf16.msra.mxu0 0
    %439 = vmatprep.subr.bf16.mxu0 0
    %440 = vmatpush2.bf16.msra.mxu0 0
    %441 = vmatprep.subr.bf16.mxu0 0
    %442 = vmatpush2.bf16.msra.mxu0 0
    %443 = vmatprep.subr.bf16.mxu0 0
    %444 = vmatpush2.bf16.msra.mxu0 0
    %445 = vmatprep.subr.bf16.mxu0 0
    %446 = vmatpush2.bf16.msra.mxu0 0
    %447 = vmatprep.subr.bf16.mxu0 0
    %448 = vmatpush2.bf16.msra.mxu0 0
    %449 = vmatprep.subr.bf16.mxu0 0
    %450 = vmatpush2.bf16.msra.mxu0 0
    %451 = vmatprep.mubr.bf16.mxu0 0
    %452 = vmatmul.mubr.bf16.gmra.mxu0 %v396
    %v453 = vpop.f32.mrf.mxu0
    %v454 = vadd.f32 0.0, %v453
    %v455 = vpop.f32.mrf.mxu0
    %v456 = vpop.f32.mrf.mxu0
    %v457 = vadd.f32 0.0, %v456
    %v458 = vpop.f32.mrf.mxu0
    %459 = vmatprep.mubr.bf16.mxu0 0
    %460 = vmatmul.mubr.bf16.gmra.mxu0 %v399
    %v461 = vpop.f32.mrf.mxu0
    %v462 = vadd.f32 0.0, %v461
    %v463 = vpop.f32.mrf.mxu0
    %v464 = vpop.f32.mrf.mxu0
    %v465 = vadd.f32 0.0, %v464
    %v466 = vpop.f32.mrf.mxu0
    %467 = vmatprep.mubr.bf16.mxu0 0
    %468 = vmatmul.mubr.bf16.gmra.mxu0 %v402
    %v469 = vpop.f32.mrf.mxu0
    %v470 = vadd.f32 0.0, %v469
    %v471 = vpop.f32.mrf.mxu0
    %v472 = vpop.f32.mrf.mxu0
    %v473 = vadd.f32 0.0, %v472
    %v474 = vpop.f32.mrf.mxu0
    %475 = vmatprep.mubr.bf16.mxu0 0
    %476 = vmatmul.mubr.bf16.gmra.mxu0 %v405
    %v477 = vpop.f32.mrf.mxu0
    %v478 = vadd.f32 0.0, %v477
    %v479 = vpop.f32.mrf.mxu0
    %v480 = vpop.f32.mrf.mxu0
    %v481 = vadd.f32 0.0, %v480
    %v482 = vpop.f32.mrf.mxu0
    %483 = vmatprep.mubr.bf16.mxu0 0
    %484 = vmatmul.mubr.bf16.gmra.mxu0 %v408
    %v485 = vpop.f32.mrf.mxu0
    %v486 = vadd.f32 0.0, %v485
    %v487 = vpop.f32.mrf.mxu0
    %v488 = vpop.f32.mrf.mxu0
    %v489 = vadd.f32 0.0, %v488
    %v490 = vpop.f32.mrf.mxu0
    %491 = vmatprep.mubr.bf16.mxu0 0
    %492 = vmatmul.mubr.bf16.gmra.mxu0 %v411
    %v493 = vpop.f32.mrf.mxu0
    %v494 = vadd.f32 0.0, %v493
    %v495 = vpop.f32.mrf.mxu0
    %v496 = vpop.f32.mrf.mxu0
    %v497 = vadd.f32 0.0, %v496
    %v498 = vpop.f32.mrf.mxu0
    %499 = vmatprep.mubr.bf16.mxu0 0
    %500 = vmatmul.mubr.bf16.gmra.mxu0 %v414
    %v501 = vpop.f32.mrf.mxu0
    %v502 = vadd.f32 0.0, %v501
    %v503 = vpop.f32.mrf.mxu0
    %v504 = vpop.f32.mrf.mxu0
    %v505 = vadd.f32 0.0, %v504
    %v506 = vpop.f32.mrf.mxu0
    %507 = vmatprep.mubr.bf16.mxu0 0
    %508 = vmatmul.mubr.bf16.gmra.mxu0 %v417
    %v509 = vpop.f32.mrf.mxu0
    %v510 = vadd.f32 0.0, %v509
    %v511 = vpop.f32.mrf.mxu0
    %v512 = vpop.f32.mrf.mxu0
    %v513 = vadd.f32 0.0, %v512
    %v514 = vpop.f32.mrf.mxu0
    %515 = vdwg.mxu0
    %v516 = vpack.c.bf16 %v457, %v454
    %v517 = vpack.c.bf16 %v465, %v462
    %v518 = vpack.c.bf16 %v473, %v470
    %v519 = vpack.c.bf16 %v481, %v478
    %v520 = vpack.c.bf16 %v489, %v486
    %v521 = vpack.c.bf16 %v497, %v494
    %v522 = vpack.c.bf16 %v505, %v502
    %v523 = vpack.c.bf16 %v513, %v510
    %v524 = vld [vmem:[%s5] sm:$0x1]
    %v526 = vlaneseq
    %v527 = vshrl.u32 %v526, 7
    %v528 = vsub.s32 0, %v527
    %v529 = vrot.slane %v524, %v528
    %531 = vmatprep.subr.bf16.mxu0 0
    %532 = vmatpush1.bf16.msra.mxu0 %v523
    %533 = vmatprep.subr.bf16.mxu0 0
    %534 = vmatpush1.bf16.msra.mxu0 %v522
    %535 = vmatprep.subr.bf16.mxu0 0
    %536 = vmatpush1.bf16.msra.mxu0 %v521
    %537 = vmatprep.subr.bf16.mxu0 0
    %538 = vmatpush1.bf16.msra.mxu0 %v520
    %539 = vmatprep.subr.bf16.mxu0 0
    %540 = vmatpush1.bf16.msra.mxu0 %v519
    %541 = vmatprep.subr.bf16.mxu0 0
    %542 = vmatpush1.bf16.msra.mxu0 %v518
    %543 = vmatprep.subr.bf16.mxu0 0
    %544 = vmatpush1.bf16.msra.mxu0 %v517
    %545 = vmatprep.subr.bf16.mxu0 0
    %546 = vmatpush1.bf16.msra.mxu0 %v516
    %547 = vmatprep.subr.bf16.mxu0 0
    %548 = vmatpush2.bf16.msra.mxu0 0
    %549 = vmatprep.subr.bf16.mxu0 0
    %550 = vmatpush2.bf16.msra.mxu0 0
    %551 = vmatprep.subr.bf16.mxu0 0
    %552 = vmatpush2.bf16.msra.mxu0 0
    %553 = vmatprep.subr.bf16.mxu0 0
    %554 = vmatpush2.bf16.msra.mxu0 0
    %555 = vmatprep.subr.bf16.mxu0 0
    %556 = vmatpush2.bf16.msra.mxu0 0
    %557 = vmatprep.subr.bf16.mxu0 0
    %558 = vmatpush2.bf16.msra.mxu0 0
    %559 = vmatprep.subr.bf16.mxu0 0
    %560 = vmatpush2.bf16.msra.mxu0 0
    %561 = vmatprep.subr.bf16.mxu0 0
    %562 = vmatpush2.bf16.msra.mxu0 0
    %563 = vmatprep.mubr.bf16.mxu0 0
    %564 = vmatmul.mubr.bf16.gmra.mxu0 %v246
    %v565 = vpop.f32.mrf.mxu0
    %v566 = vadd.f32 %v529, %v565
    %v567 = vpop.f32.mrf.mxu0
    %v568 = vpop.f32.mrf.mxu0
    %v569 = vadd.f32 %v529, %v568
    %v570 = vpop.f32.mrf.mxu0
    %571 = vmatprep.mubr.bf16.mxu0 0
    %572 = vmatmul.mubr.bf16.gmra.mxu0 %v247
    %v573 = vpop.f32.mrf.mxu0
    %v574 = vadd.f32 %v529, %v573
    %v575 = vpop.f32.mrf.mxu0
    %v576 = vpop.f32.mrf.mxu0
    %v577 = vadd.f32 %v529, %v576
    %v578 = vpop.f32.mrf.mxu0
    %579 = vmatprep.mubr.bf16.mxu0 0
    %580 = vmatmul.mubr.bf16.gmra.mxu0 %v248
    %v581 = vpop.f32.mrf.mxu0
    %v582 = vadd.f32 %v529, %v581
    %v583 = vpop.f32.mrf.mxu0
    %v584 = vpop.f32.mrf.mxu0
    %v585 = vadd.f32 %v529, %v584
    %v586 = vpop.f32.mrf.mxu0
    %587 = vmatprep.mubr.bf16.mxu0 0
    %588 = vmatmul.mubr.bf16.gmra.mxu0 %v249
    %v589 = vpop.f32.mrf.mxu0
    %v590 = vadd.f32 %v529, %v589
    %v591 = vpop.f32.mrf.mxu0
    %v592 = vpop.f32.mrf.mxu0
    %v593 = vadd.f32 %v529, %v592
    %v594 = vpop.f32.mrf.mxu0
    %595 = vmatprep.mubr.bf16.mxu0 0
    %596 = vmatmul.mubr.bf16.gmra.mxu0 %v250
    %v597 = vpop.f32.mrf.mxu0
    %v598 = vadd.f32 %v529, %v597
    %v599 = vpop.f32.mrf.mxu0
    %v600 = vpop.f32.mrf.mxu0
    %v601 = vadd.f32 %v529, %v600
    %v602 = vpop.f32.mrf.mxu0
    %603 = vmatprep.mubr.bf16.mxu0 0
    %604 = vmatmul.mubr.bf16.gmra.mxu0 %v251
    %v605 = vpop.f32.mrf.mxu0
    %v606 = vadd.f32 %v529, %v605
    %v607 = vpop.f32.mrf.mxu0
    %v608 = vpop.f32.mrf.mxu0
    %v609 = vadd.f32 %v529, %v608
    %v610 = vpop.f32.mrf.mxu0
    %611 = vmatprep.mubr.bf16.mxu0 0
    %612 = vmatmul.mubr.bf16.gmra.mxu0 %v252
    %v613 = vpop.f32.mrf.mxu0
    %v614 = vadd.f32 %v529, %v613
    %v615 = vpop.f32.mrf.mxu0
    %v616 = vpop.f32.mrf.mxu0
    %v617 = vadd.f32 %v529, %v616
    %v618 = vpop.f32.mrf.mxu0
    %619 = vmatprep.mubr.bf16.mxu0 0
    %620 = vmatmul.mubr.bf16.gmra.mxu0 %v253
    %v621 = vpop.f32.mrf.mxu0
    %v622 = vadd.f32 %v529, %v621
    %v623 = vpop.f32.mrf.mxu0
    %v624 = vpop.f32.mrf.mxu0
    %v625 = vadd.f32 %v529, %v624
    %v626 = vpop.f32.mrf.mxu0
    %627 = vdwg.mxu0
    %628 = vst [vmem:[#allocation2] sm:$0xff] %v566
    %629 = vst [vmem:[#allocation2 + $0x8] sm:$0xff] %v569
    %630 = vst [vmem:[#allocation2 + $0x10] sm:$0xff] %v574
    %631 = vst [vmem:[#allocation2 + $0x18] sm:$0xff] %v577
    %632 = vst [vmem:[#allocation2 + $0x20] sm:$0xff] %v582
    %633 = vst [vmem:[#allocation2 + $0x28] sm:$0xff] %v585
    %634 = vst [vmem:[#allocation2 + $0x30] sm:$0xff] %v590
    %635 = vst [vmem:[#allocation2 + $0x38] sm:$0xff] %v593
    %636 = vst [vmem:[#allocation2 + $0x40] sm:$0xff] %v598
    %637 = vst [vmem:[#allocation2 + $0x48] sm:$0xff] %v601
    %638 = vst [vmem:[#allocation2 + $0x50] sm:$0xff] %v606
    %639 = vst [vmem:[#allocation2 + $0x58] sm:$0xff] %v609
    %640 = vst [vmem:[#allocation2 + $0x60] sm:$0xff] %v614
    %641 = vst [vmem:[#allocation2 + $0x68] sm:$0xff] %v617
    %642 = vst [vmem:[#allocation2 + $0x70] sm:$0xff] %v622
    %643 = vst [vmem:[#allocation2 + $0x78] sm:$0xff] %v625
    // Predicated region
    $region26: #{tpu_custom_call.1} parent=1 // pred_check
      _
    $region27: #{tpu_custom_call.1} parent=1 // pred_check_branch
      %645 = sbr.rel (0) target = $region29
    $region28: #{tpu_custom_call.1} parent=1 // pred_region
      %s647 = ssub.s32 2048, 2048
      %648 = vsyncadd [#allocation3], %s647
      %s649 = sshll.u32 [#allocation2], 4
      %s650 = int_to_ptr.vmem [resolvable:$true] %s649
      %655 = dma.vmem_to_hbm [thread:$0]  %s650, 2048, %s6, [#allocation3], 128, 128, 8
    $region29: #{tpu_custom_call.1} parent=1 // pred_fallthru
      _
    // Predicated region
    $region30: #{tpu_custom_call.1} parent=1 // pred_check
      _
    $region31: #{tpu_custom_call.1} parent=1 // pred_check_branch
      %657 = sbr.rel (0) target = $region33
    $region32: #{tpu_custom_call.1} parent=1 // pred_region
      %658 = dma.done [#allocation3], 2048
    $region33: #{tpu_custom_call.1} parent=1 // pred_fallthru
      _
    %659 = vsyncpa [#allocation3], 1

</llo_original>
